<compile_context>
chip_gen: v7x
topology: tpu7x:2x2x1
jax: 0.10.0
libtpu: 0.0.40
codegen_flags: <defaults>
</compile_context>

<pallas_src>
import functools

import jax
import jax.numpy as jnp
from jax import lax
from jax.experimental import pallas as pl
from jax.experimental.pallas import tpu as pltpu


def _round_up(x, m):
    return (x + m - 1) // m * m


def _deberta_self_output_kernel(x_ref, res_ref, wt_ref, params_ref, o_ref, *,
                                eps, mxu_dtype):
    # ---- dense: y = x @ W^T (+ bias folded into the LN input below) ----
    x = x_ref[...]
    w = wt_ref[...]
    if mxu_dtype is not None:
        # Feed the MXU its native narrow dtype; accumulate in f32.
        x = x.astype(mxu_dtype)
        w = w.astype(mxu_dtype)
    y = jnp.dot(x, w, preferred_element_type=jnp.float32)

    bias = params_ref[0:1, :].astype(jnp.float32)
    gamma = params_ref[1:2, :].astype(jnp.float32)
    beta = params_ref[2:3, :].astype(jnp.float32)

    # StableDropout in eval mode is the identity.
    # TODO(synk): training-mode XDropout (stochastic mask + 1/(1-p) scale) not implemented.

    # ---- residual add + DebertaLayerNorm (TF style: eps inside the sqrt), f32 ----
    h = y + bias + res_ref[...].astype(jnp.float32)
    mean = jnp.mean(h, axis=-1, keepdims=True)
    d = h - mean                                   # single centered temporary, reused
    var = jnp.mean(d * d, axis=-1, keepdims=True)
    inv_std = lax.rsqrt(var + eps)                 # EUP rsqrt instead of sqrt + divide
    # Full f32 epilogue, one cast at the store (bit-identical to the torch module for
    # f32 activations; for bf16 activations torch casts hn before scaling).
    o_ref[...] = (gamma * (d * inv_std) + beta).astype(o_ref.dtype)


def deberta_self_output(hidden_states, input_tensor, dense_w_t, dense_b,
                        ln_gamma, ln_beta, *, eps=1e-12, tm=None,
                        mxu_dtype=jnp.bfloat16):
    """Fused DebertaSelfOutput forward (eval mode).

    hidden_states, input_tensor : (B, S, H)
    dense_w_t                   : (H_in, H_out) -- nn.Linear weight ALREADY transposed
                                  (and ideally already cast to bf16 at load time)
    dense_b, ln_gamma, ln_beta  : (H,)
    mxu_dtype                   : dtype fed to the MXU (None -> use input dtype)
    """
    B, S, H = hidden_states.shape
    M = B * S
    dtype = hidden_states.dtype

    # Device VMEM budget (v5e/v6e: 128 MiB, v7x: 64 MiB). Fallback to the safe 64 MiB.
    try:
        vmem_cap = int(getattr(pltpu.get_tpu_info(), "vmem_capacity_bytes",
                               64 * 1024 * 1024))
    except Exception:
        vmem_cap = 64 * 1024 * 1024

    # Row tile: 512 on 128-MiB parts, 256 on 64-MiB parts; clamp to the row count,
    # aligned to the packed sublane tiling of the activation dtype.
    if tm is None:
        tm = 512 if vmem_cap >= 96 * 1024 * 1024 else 256
    if dtype == jnp.float32:
        row_align = 8
    elif dtype == jnp.bfloat16:
        row_align = 16
    else:
        row_align = 32
    tm_eff = min(tm, _round_up(M, row_align))
    num_tiles = pl.cdiv(M, tm_eff)   # partial last tile handled by Pallas masking

    x2 = hidden_states.reshape(M, H)
    r2 = input_tensor.reshape(M, H)
    # Fuse the three (H,) parameter vectors into one constant-index (3, H) operand.
    params = jnp.stack(
        [dense_b.astype(jnp.float32),
         ln_gamma.astype(jnp.float32),
         ln_beta.astype(jnp.float32)], axis=0)

    # VMEM budget: 3 streamed (tm, H) tiles double-buffered + weight (worst case two
    # copies) + fused params + f32 epilogue temporaries, plus a small headroom;
    # never request more than the physical VMEM.
    act_bytes = jnp.dtype(dtype).itemsize
    w_bytes = H * H * jnp.dtype(dense_w_t.dtype).itemsize
    est = (3 * 2 * tm_eff * H * act_bytes      # x / residual / out, double-buffered
           + 2 * w_bytes                       # W^T (worst case if not single-buffered)
           + 2 * 8 * H * 4                     # fused params, sublane-padded
           + 3 * tm_eff * H * 4                # f32 y/h/d epilogue temporaries
           + (4 << 20))                        # headroom
    vmem_limit = int(min(vmem_cap, max(est, 32 * 1024 * 1024)))

    kernel = functools.partial(_deberta_self_output_kernel, eps=eps,
                               mxu_dtype=mxu_dtype)

    def _build(single_buffer_consts):
        const_kwargs = ({"pipeline_mode": pl.Buffered(1)}
                        if single_buffer_consts else {})
        in_specs = [
            pl.BlockSpec((tm_eff, H), lambda i: (i, 0)),            # hidden_states tile
            pl.BlockSpec((tm_eff, H), lambda i: (i, 0)),            # residual tile
            pl.BlockSpec((H, H), lambda i: (0, 0), **const_kwargs),  # W^T (constant)
            pl.BlockSpec((3, H), lambda i: (0, 0), **const_kwargs),  # bias/gamma/beta
        ]
        return pl.pallas_call(
            kernel,
            out_shape=jax.ShapeDtypeStruct((M, H), dtype),
            grid_spec=pltpu.PrefetchScalarGridSpec(
                num_scalar_prefetch=0,
                grid=(num_tiles,),
                in_specs=in_specs,
                out_specs=pl.BlockSpec((tm_eff, H), lambda i: (i, 0)),
            ),
            compiler_params=pltpu.CompilerParams(
                dimension_semantics=("parallel",),  # independent row tiles -> megacore
                vmem_limit_bytes=vmem_limit,
            ),
        )

    try:
        out2 = _build(True)(x2, r2, dense_w_t, params)
    except Exception:
        # Fallback: if this jax version rejects Buffered(1) single-buffering of the
        # grid-invariant operands, use default (double-buffered) specs.
        out2 = _build(False)(x2, r2, dense_w_t, params)

    return out2.reshape(B, S, H)


def _reference(hidden_states, input_tensor, dense_w, dense_b, ln_gamma, ln_beta,
               eps=1e-12):
    y = jnp.dot(hidden_states, dense_w.T,
                precision=lax.Precision.HIGHEST) + dense_b
    h = (y + input_tensor).astype(jnp.float32)
    mean = h.mean(-1, keepdims=True)
    var = ((h - mean) ** 2).mean(-1, keepdims=True)
    hn = ((h - mean) / jnp.sqrt(var + eps)).astype(hidden_states.dtype)
    return ln_gamma * hn + ln_beta


def _run_case(key, B, S, H, *, mxu_dtype, w_dtype, atol, rtol):
    k1, k2, k3, k4 = jax.random.split(key, 4)
    hidden_states = jax.random.normal(k1, (B, S, H), dtype=jnp.float32)
    input_tensor = jax.random.normal(k2, (B, S, H), dtype=jnp.float32)

    # deterministic synthetic parameters (nn.Linear(H, H), DebertaLayerNorm(H))
    dense_w = jax.random.normal(k3, (H, H), dtype=jnp.float32) * (1.0 / jnp.sqrt(H))
    dense_b = jax.random.normal(k4, (H,), dtype=jnp.float32) * 0.02
    ln_gamma = jnp.ones((H,), dtype=jnp.float32)
    ln_beta = jnp.zeros((H,), dtype=jnp.float32)

    # One-time parameter prep (transpose + optional bf16 cast at load time).
    dense_w_t = jnp.asarray(dense_w.T, dtype=w_dtype)

    out = deberta_self_output(hidden_states, input_tensor, dense_w_t, dense_b,
                              ln_gamma, ln_beta, mxu_dtype=mxu_dtype)
    out = jax.block_until_ready(out)

    ref = _reference(hidden_states, input_tensor, dense_w, dense_b,
                     ln_gamma, ln_beta)
    assert out.shape == (B, S, H)
    assert not bool(jnp.any(jnp.isnan(out))), f"NaNs for shape {(B, S, H)}"
    assert jnp.allclose(out, ref, atol=atol, rtol=rtol), \
        f"mismatch for shape {(B, S, H)}"


if __name__ == "__main__":
    key = jax.random.PRNGKey(0)
    k_a, k_b = jax.random.split(key)

    # Small shape, f32 MXU path, single grid step (tile clamped to the row count).
    _run_case(k_a, B=2, S=8, H=32, mxu_dtype=None, w_dtype=jnp.float32,
              atol=1e-5, rtol=1e-5)

    # Larger shape: bf16 weights + bf16 MXU inputs (f32 accumulate), multi-step grid
    # with a masked partial last row-tile (M = 600, no host-side pad / slice).
    _run_case(k_b, B=2, S=300, H=128, mxu_dtype=jnp.bfloat16, w_dtype=jnp.bfloat16,
              atol=5e-2, rtol=1e-2)

    print("KERNEL_OK")
</pallas_src>

<mosaic_0001>
module attributes {stable_mosaic.version = 11 : i64} {
  func.func @_deberta_self_output_kernel(%arg0: i32, %arg1: memref<16x32xf32, #tpu.memory_space<vmem>>, %arg2: memref<16x32xf32, #tpu.memory_space<vmem>>, %arg3: memref<32x32xf32, #tpu.memory_space<vmem>>, %arg4: memref<3x32xf32, #tpu.memory_space<vmem>>, %arg5: memref<16x32xf32, #tpu.memory_space<vmem>>) attributes {dimension_semantics = [#tpu.dimension_semantics<parallel>], iteration_bounds = array<i64: 1>, scalar_prefetch = 0 : i64, scratch_operands = 0 : i64, tpu.core_type = #tpu.core_type<tc>, window_params = [{transform_indices = @transform_0, window_bounds = array<i64: 16, 32>}, {transform_indices = @transform_1, window_bounds = array<i64: 16, 32>}, {pipeline_mode = #tpu.pipeline_mode<synchronous>, transform_indices = @transform_2, window_bounds = array<i64: 32, 32>}, {pipeline_mode = #tpu.pipeline_mode<synchronous>, transform_indices = @transform_3, window_bounds = array<i64: 3, 32>}, {transform_indices = @transform_4, window_bounds = array<i64: 16, 32>}]} {
    %c0 = arith.constant 0 : index
    %c0_0 = arith.constant 0 : index
    %0 = vector.load %arg1[%c0, %c0_0] : memref<16x32xf32, #tpu.memory_space<vmem>>, vector<16x32xf32>
    %c0_1 = arith.constant 0 : index
    %c0_2 = arith.constant 0 : index
    %1 = vector.load %arg3[%c0_1, %c0_2] : memref<32x32xf32, #tpu.memory_space<vmem>>, vector<32x32xf32>
    %cst = arith.constant dense<0.000000e+00> : vector<16x32xf32>
    %2 = tpu.matmul %0, %1, %cst {dimension_numbers = #tpu.dot_dimension_numbers<[1], [0], [0], [1], [0, 0, 1, 1], [], []>} : vector<16x32xf32>, vector<32x32xf32>, vector<16x32xf32> -> vector<16x32xf32>
    %c0_3 = arith.constant 0 : index
    %c0_4 = arith.constant 0 : index
    %3 = vector.load %arg4[%c0_3, %c0_4] : memref<3x32xf32, #tpu.memory_space<vmem>>, vector<1x32xf32>
    %c1 = arith.constant 1 : index
    %c0_5 = arith.constant 0 : index
    %4 = vector.load %arg4[%c1, %c0_5] : memref<3x32xf32, #tpu.memory_space<vmem>>, vector<1x32xf32>
    %c2 = arith.constant 2 : index
    %c0_6 = arith.constant 0 : index
    %5 = vector.load %arg4[%c2, %c0_6] : memref<3x32xf32, #tpu.memory_space<vmem>>, vector<1x32xf32>
    %6 = vector.broadcast %3 : vector<1x32xf32> to vector<16x32xf32>
    %7 = arith.addf %2, %6 : vector<16x32xf32>
    %c0_7 = arith.constant 0 : index
    %c0_8 = arith.constant 0 : index
    %8 = vector.load %arg2[%c0_7, %c0_8] : memref<16x32xf32, #tpu.memory_space<vmem>>, vector<16x32xf32>
    %9 = arith.addf %7, %8 : vector<16x32xf32>
    %cst_9 = arith.constant dense<0.000000e+00> : vector<16xf32>
    %10 = vector.multi_reduction <add>, %9, %cst_9 [1] : vector<16x32xf32> to vector<16xf32>
    %11 = vector.shape_cast %10 : vector<16xf32> to vector<16x1xf32>
    %cst_10 = arith.constant 3.200000e+01 : f32
    %12 = vector.broadcast %cst_10 : f32 to vector<16x1xf32>
    %13 = arith.divf %11, %12 : vector<16x1xf32>
    %14 = vector.broadcast %13 : vector<16x1xf32> to vector<16x32xf32>
    %15 = arith.subf %9, %14 : vector<16x32xf32>
    %16 = arith.mulf %15, %15 : vector<16x32xf32>
    %cst_11 = arith.constant dense<0.000000e+00> : vector<16xf32>
    %17 = vector.multi_reduction <add>, %16, %cst_11 [1] : vector<16x32xf32> to vector<16xf32>
    %18 = vector.shape_cast %17 : vector<16xf32> to vector<16x1xf32>
    %cst_12 = arith.constant 3.200000e+01 : f32
    %19 = vector.broadcast %cst_12 : f32 to vector<16x1xf32>
    %20 = arith.divf %18, %19 : vector<16x1xf32>
    %cst_13 = arith.constant 9.99999996E-13 : f32
    %21 = vector.broadcast %cst_13 : f32 to vector<16x1xf32>
    %22 = arith.addf %20, %21 : vector<16x1xf32>
    %23 = math.rsqrt %22 : vector<16x1xf32>
    %24 = vector.broadcast %23 : vector<16x1xf32> to vector<16x32xf32>
    %25 = arith.mulf %15, %24 : vector<16x32xf32>
    %26 = vector.broadcast %4 : vector<1x32xf32> to vector<16x32xf32>
    %27 = arith.mulf %26, %25 : vector<16x32xf32>
    %28 = vector.broadcast %5 : vector<1x32xf32> to vector<16x32xf32>
    %29 = arith.addf %27, %28 : vector<16x32xf32>
    %c0_14 = arith.constant 0 : index
    %c0_15 = arith.constant 0 : index
    %30 = vector.load %arg5[%c0_14, %c0_15] : memref<16x32xf32, #tpu.memory_space<vmem>>, vector<16x32xf32>
    tpu.vector_store %arg5[%c0_14, %c0_15], %29 {strides = array<i32>} : memref<16x32xf32, #tpu.memory_space<vmem>>, vector<16x32xf32>,
    return
  }
  func.func @transform_0(%arg0: i32) -> (i32, i32) {
    %c0_i32 = arith.constant 0 : i32
    %c0_i32_0 = arith.constant 0 : i32
    return %arg0, %c0_i32 : i32, i32
  }
  func.func @transform_1(%arg0: i32) -> (i32, i32) {
    %c0_i32 = arith.constant 0 : i32
    %c0_i32_0 = arith.constant 0 : i32
    return %arg0, %c0_i32 : i32, i32
  }
  func.func @transform_2(%arg0: i32) -> (i32, i32) {
    %c0_i32 = arith.constant 0 : i32
    %c0_i32_0 = arith.constant 0 : i32
    %c0_i32_1 = arith.constant 0 : i32
    return %c0_i32, %c0_i32_0 : i32, i32
  }
  func.func @transform_3(%arg0: i32) -> (i32, i32) {
    %c0_i32 = arith.constant 0 : i32
    %c0_i32_0 = arith.constant 0 : i32
    %c0_i32_1 = arith.constant 0 : i32
    return %c0_i32, %c0_i32_0 : i32, i32
  }
  func.func @transform_4(%arg0: i32) -> (i32, i32) {
    %c0_i32 = arith.constant 0 : i32
    %c0_i32_0 = arith.constant 0 : i32
    return %arg0, %c0_i32 : i32, i32
  }
}

module attributes {stable_mosaic.version = 11 : i64} {
  func.func @_deberta_self_output_kernel(%arg0: i32, %arg1: memref<16x32xf32, #tpu.memory_space<vmem>>, %arg2: memref<16x32xf32, #tpu.memory_space<vmem>>, %arg3: memref<32x32xf32, #tpu.memory_space<vmem>>, %arg4: memref<3x32xf32, #tpu.memory_space<vmem>>, %arg5: memref<16x32xf32, #tpu.memory_space<vmem>>) attributes {dimension_semantics = [#tpu.dimension_semantics<parallel>], iteration_bounds = array<i64: 1>, scalar_prefetch = 0 : i64, scratch_operands = 0 : i64, tpu.core_type = #tpu.core_type<tc>, window_params = [{transform_indices = @transform_0, window_bounds = array<i64: 16, 32>}, {transform_indices = @transform_1, window_bounds = array<i64: 16, 32>}, {pipeline_mode = #tpu.pipeline_mode<synchronous>, transform_indices = @transform_2, window_bounds = array<i64: 32, 32>}, {pipeline_mode = #tpu.pipeline_mode<synchronous>, transform_indices = @transform_3, window_bounds = array<i64: 3, 32>}, {transform_indices = @transform_4, window_bounds = array<i64: 16, 32>}]} {
    %c0 = arith.constant 0 : index
    %c0_0 = arith.constant 0 : index
    %0 = vector.load %arg1[%c0, %c0_0] : memref<16x32xf32, #tpu.memory_space<vmem>>, vector<16x32xf32>
    %c0_1 = arith.constant 0 : index
    %c0_2 = arith.constant 0 : index
    %1 = vector.load %arg3[%c0_1, %c0_2] : memref<32x32xf32, #tpu.memory_space<vmem>>, vector<32x32xf32>
    %cst = arith.constant dense<0.000000e+00> : vector<16x32xf32>
    %2 = tpu.matmul %0, %1, %cst {dimension_numbers = #tpu.dot_dimension_numbers<[1], [0], [0], [1], [0, 0, 1, 1], [], []>} : vector<16x32xf32>, vector<32x32xf32>, vector<16x32xf32> -> vector<16x32xf32>
    %c0_3 = arith.constant 0 : index
    %c0_4 = arith.constant 0 : index
    %3 = vector.load %arg4[%c0_3, %c0_4] : memref<3x32xf32, #tpu.memory_space<vmem>>, vector<1x32xf32>
    %c1 = arith.constant 1 : index
    %c0_5 = arith.constant 0 : index
    %4 = vector.load %arg4[%c1, %c0_5] : memref<3x32xf32, #tpu.memory_space<vmem>>, vector<1x32xf32>
    %c2 = arith.constant 2 : index
    %c0_6 = arith.constant 0 : index
    %5 = vector.load %arg4[%c2, %c0_6] : memref<3x32xf32, #tpu.memory_space<vmem>>, vector<1x32xf32>
    %6 = vector.broadcast %3 : vector<1x32xf32> to vector<16x32xf32>
    %7 = arith.addf %2, %6 : vector<16x32xf32>
    %c0_7 = arith.constant 0 : index
    %c0_8 = arith.constant 0 : index
    %8 = vector.load %arg2[%c0_7, %c0_8] : memref<16x32xf32, #tpu.memory_space<vmem>>, vector<16x32xf32>
    %9 = arith.addf %7, %8 : vector<16x32xf32>
    %cst_9 = arith.constant dense<0.000000e+00> : vector<16xf32>
    %10 = vector.multi_reduction <add>, %9, %cst_9 [1] : vector<16x32xf32> to vector<16xf32>
    %11 = vector.shape_cast %10 : vector<16xf32> to vector<16x1xf32>
    %cst_10 = arith.constant 3.200000e+01 : f32
    %12 = vector.broadcast %cst_10 : f32 to vector<16x1xf32>
    %13 = arith.divf %11, %12 : vector<16x1xf32>
    %14 = vector.broadcast %13 : vector<16x1xf32> to vector<16x32xf32>
    %15 = arith.subf %9, %14 : vector<16x32xf32>
    %16 = arith.mulf %15, %15 : vector<16x32xf32>
    %cst_11 = arith.constant dense<0.000000e+00> : vector<16xf32>
    %17 = vector.multi_reduction <add>, %16, %cst_11 [1] : vector<16x32xf32> to vector<16xf32>
    %18 = vector.shape_cast %17 : vector<16xf32> to vector<16x1xf32>
    %cst_12 = arith.constant 3.200000e+01 : f32
    %19 = vector.broadcast %cst_12 : f32 to vector<16x1xf32>
    %20 = arith.divf %18, %19 : vector<16x1xf32>
    %cst_13 = arith.constant 9.99999996E-13 : f32
    %21 = vector.broadcast %cst_13 : f32 to vector<16x1xf32>
    %22 = arith.addf %20, %21 : vector<16x1xf32>
    %23 = math.rsqrt %22 : vector<16x1xf32>
    %24 = vector.broadcast %23 : vector<16x1xf32> to vector<16x32xf32>
    %25 = arith.mulf %15, %24 : vector<16x32xf32>
    %26 = vector.broadcast %4 : vector<1x32xf32> to vector<16x32xf32>
    %27 = arith.mulf %26, %25 : vector<16x32xf32>
    %28 = vector.broadcast %5 : vector<1x32xf32> to vector<16x32xf32>
    %29 = arith.addf %27, %28 : vector<16x32xf32>
    %c0_14 = arith.constant 0 : index
    %c0_15 = arith.constant 0 : index
    %30 = vector.load %arg5[%c0_14, %c0_15] : memref<16x32xf32, #tpu.memory_space<vmem>>, vector<16x32xf32>
    tpu.vector_store %arg5[%c0_14, %c0_15], %29 {strides = array<i32>} : memref<16x32xf32, #tpu.memory_space<vmem>>, vector<16x32xf32>,
    return
  }
  func.func @transform_0(%arg0: i32) -> (i32, i32) {
    %c0_i32 = arith.constant 0 : i32
    %c0_i32_0 = arith.constant 0 : i32
    return %arg0, %c0_i32 : i32, i32
  }
  func.func @transform_1(%arg0: i32) -> (i32, i32) {
    %c0_i32 = arith.constant 0 : i32
    %c0_i32_0 = arith.constant 0 : i32
    return %arg0, %c0_i32 : i32, i32
  }
  func.func @transform_2(%arg0: i32) -> (i32, i32) {
    %c0_i32 = arith.constant 0 : i32
    %c0_i32_0 = arith.constant 0 : i32
    %c0_i32_1 = arith.constant 0 : i32
    return %c0_i32, %c0_i32_0 : i32, i32
  }
  func.func @transform_3(%arg0: i32) -> (i32, i32) {
    %c0_i32 = arith.constant 0 : i32
    %c0_i32_0 = arith.constant 0 : i32
    %c0_i32_1 = arith.constant 0 : i32
    return %c0_i32, %c0_i32_0 : i32, i32
  }
  func.func @transform_4(%arg0: i32) -> (i32, i32) {
    %c0_i32 = arith.constant 0 : i32
    %c0_i32_0 = arith.constant 0 : i32
    return %arg0, %c0_i32 : i32, i32
  }
}

</mosaic_0001>

<llo_original>
// kernel: tpu_custom_call.1
$region0: #{tpu_custom_call.1}
  #allocation0 [shape = 'u32[]', space=smem, size = 0x4, offset = 0x4, fixed_abs, tag = 'smem constant byte address 0x4 - core index']
  #allocation1 [shape = 'u32[144,128]{1,0:T(1,128)}', space=vmem, size = 0x12000, scoped, tag = 'internal scratch']
  %s0 = inlined_call_operand.hbm [shape: f32[16,32], index: 0, kind: input, shape index: {}]
  %s1 = inlined_call_operand.hbm [shape: f32[16,32], index: 1, kind: input, shape index: {}]
  %s2 = inlined_call_operand.hbm [shape: f32[32,32], index: 2, kind: input, shape index: {}]
  %s3 = inlined_call_operand.vmem [shape: f32[3,32], index: 3, kind: input, shape index: {}]
  %s4 = inlined_call_operand.hbm [shape: f32[16,32], index: 4, kind: output, shape index: {}]
  %s5 = sld [smem:[#allocation0]]
  $region38: #{tpu_custom_call.1} parent=0
    _
  %s7 = ssub.s32 1, %s5
  %s8 = scalar_select 0, %s7, %s5
  $region1: #{tpu_custom_call.1} parent=0
    #allocation2 [shape = 'u8[8192]{0}', space=vmem, size = 0x2000, scoped, tag = 'input window, operand 0, single buffered']
    #allocation3 [shape = 's32[1]{0}', space=sflag, size = 0x4, scoped, tag = 'scoped memory for tpu_custom_call.1']
    #allocation4 [shape = 's32[1]{0}', space=sflag, size = 0x4, scoped, tag = 'scoped memory for tpu_custom_call.1']
    #allocation5 [shape = 'u8[8192]{0}', space=vmem, size = 0x2000, scoped, tag = 'input window, operand 1, single buffered']
    #allocation6 [shape = 's32[1]{0}', space=sflag, size = 0x4, scoped, tag = 'scoped memory for tpu_custom_call.1']
    #allocation7 [shape = 'u8[16384]{0}', space=vmem, size = 0x4000, scoped, tag = 'input window, operand 2, single buffered']
    #allocation8 [shape = 'u8[8192]{0}', space=vmem, size = 0x2000, scoped, tag = 'output window, operand 0, single buffered']
    %9 = vsyncpa [#allocation3], 0
    %10 = vsyncpa [#allocation6], 0
    %11 = vsyncpa [#allocation4], 0
    // Predicated region
    $region2: #{tpu_custom_call.1} parent=1 // pred_check
      _
    $region3: #{tpu_custom_call.1} parent=1 // pred_check_branch
      %13 = sbr.rel (0) target = $region5
    $region4: #{tpu_custom_call.1} parent=1 // pred_region
      %s15 = ssub.s32 256, 256
      %16 = vsyncadd [#allocation3], %s15
      %s17 = sshll.u32 [#allocation2], 4
      %s18 = int_to_ptr.vmem [resolvable:$true] %s17
      %23 = dma.hbm_to_vmem [thread:$0]  %s0, 256, %s18, [#allocation3], 128, 128, 8
    $region5: #{tpu_custom_call.1} parent=1 // pred_fallthru
      _
    // Predicated region
    $region6: #{tpu_custom_call.1} parent=1 // pred_check
      _
    $region7: #{tpu_custom_call.1} parent=1 // pred_check_branch
      %25 = sbr.rel (0) target = $region9
    $region8: #{tpu_custom_call.1} parent=1 // pred_region
      %s27 = ssub.s32 256, 256
      %28 = vsyncadd [#allocation6], %s27
      %s29 = sshll.u32 [#allocation5], 4
      %s30 = int_to_ptr.vmem [resolvable:$true] %s29
      %35 = dma.hbm_to_vmem [thread:$0]  %s1, 256, %s30, [#allocation6], 128, 128, 8
    $region9: #{tpu_custom_call.1} parent=1 // pred_fallthru
      _
    // Predicated region
    $region10: #{tpu_custom_call.1} parent=1 // pred_check
      _
    $region11: #{tpu_custom_call.1} parent=1 // pred_check_branch
      %37 = sbr.rel (0) target = $region13
    $region12: #{tpu_custom_call.1} parent=1 // pred_region
      %s39 = ssub.s32 512, 512
      %40 = vsyncadd [#allocation6], %s39
      %s41 = sshll.u32 [#allocation7], 4
      %s42 = int_to_ptr.vmem [resolvable:$true] %s41
      %47 = dma.hbm_to_vmem [thread:$0]  %s2, 512, %s42, [#allocation6], 128, 128, 8
    $region13: #{tpu_custom_call.1} parent=1 // pred_fallthru
      _
    // Predicated region
    $region14: #{tpu_custom_call.1} parent=1 // pred_check
      _
    $region15: #{tpu_custom_call.1} parent=1 // pred_check_branch
      %49 = sbr.rel (0) target = $region17
    $region16: #{tpu_custom_call.1} parent=1 // pred_region
      _
    $region17: #{tpu_custom_call.1} parent=1 // pred_fallthru
      _
    // Predicated region
    $region18: #{tpu_custom_call.1} parent=1 // pred_check
      _
    $region19: #{tpu_custom_call.1} parent=1 // pred_check_branch
      %51 = sbr.rel (0) target = $region21
    $region20: #{tpu_custom_call.1} parent=1 // pred_region
      %52 = dma.done [#allocation3], 256
    $region21: #{tpu_custom_call.1} parent=1 // pred_fallthru
      _
    // Predicated region
    $region22: #{tpu_custom_call.1} parent=1 // pred_check
      _
    $region23: #{tpu_custom_call.1} parent=1 // pred_check_branch
      %54 = sbr.rel (0) target = $region25
    $region24: #{tpu_custom_call.1} parent=1 // pred_region
      %55 = dma.done [#allocation6], 256
    $region25: #{tpu_custom_call.1} parent=1 // pred_fallthru
      _
    // Predicated region
    $region26: #{tpu_custom_call.1} parent=1 // pred_check
      _
    $region27: #{tpu_custom_call.1} parent=1 // pred_check_branch
      %57 = sbr.rel (0) target = $region29
    $region28: #{tpu_custom_call.1} parent=1 // pred_region
      %58 = dma.done [#allocation6], 512
    $region29: #{tpu_custom_call.1} parent=1 // pred_fallthru
      _
    %v59 = vld [vmem:[#allocation2] sm:$0xff]
    %v60 = vld [vmem:[#allocation2 + $0x8] sm:$0xff]
    %v61 = vld [vmem:[#allocation7] sm:$0xff]
    %v62 = vld [vmem:[#allocation7 + $0x8] sm:$0xff]
    %v63 = vld [vmem:[#allocation7 + $0x10] sm:$0xff]
    %v64 = vld [vmem:[#allocation7 + $0x18] sm:$0xff]
    %v65 = vld [vmem:[%s3] sm:$0x1]
    %v66 = vld [vmem:[%s3 + $0x1] sm:$0x1]
    %v67 = vld [vmem:[%s3 + $0x2] sm:$0x1]
    %v68 = vlaneseq
    %v69 = vshrl.u32 %v68, 7
    %v70 = vsub.s32 0, %v69
    %v71 = vrot.slane %v65, %v70
    %vm72 = vcmask 261120
    %v74 = vsel %vm72, %v59, 0
    %v77 = vsel %vm72, %v60, 0
    %79 = vmatprep.subr.mxu0 0.0
    %80 = vmatpush1.msra.mxu0 %v61
    %81 = vmatprep.subr.mxu0 0.0
    %82 = vmatpush1.msra.mxu0 %v62
    %83 = vmatprep.subr.mxu0 0.0
    %84 = vmatpush1.msra.mxu0 %v63
    %85 = vmatprep.subr.mxu0 0.0
    %86 = vmatpush1.msra.mxu0 %v64
    %87 = vmatprep.subr.mxu0 0.0
    %88 = vmatpush1.msra.mxu0 0.0
    %89 = vmatprep.subr.mxu0 0.0
    %90 = vmatpush1.msra.mxu0 0.0
    %91 = vmatprep.subr.mxu0 0.0
    %92 = vmatpush1.msra.mxu0 0.0
    %93 = vmatprep.subr.mxu0 0.0
    %94 = vmatpush1.msra.mxu0 0.0
    %95 = vmatprep.subr.mxu0 0.0
    %96 = vmatpush1.msra.mxu0 0.0
    %97 = vmatprep.subr.mxu0 0.0
    %98 = vmatpush1.msra.mxu0 0.0
    %99 = vmatprep.subr.mxu0 0.0
    %100 = vmatpush1.msra.mxu0 0.0
    %101 = vmatprep.subr.mxu0 0.0
    %102 = vmatpush1.msra.mxu0 0.0
    %103 = vmatprep.subr.mxu0 0.0
    %104 = vmatpush1.msra.mxu0 0.0
    %105 = vmatprep.subr.mxu0 0.0
    %106 = vmatpush1.msra.mxu0 0.0
    %107 = vmatprep.subr.mxu0 0.0
    %108 = vmatpush1.msra.mxu0 0.0
    %109 = vmatprep.subr.mxu0 0.0
    %110 = vmatpush1.msra.mxu0 0.0
    %111 = vmatprep.subr.mxu0 0.0
    %112 = vmatpush1.msra.mxu0 0.0
    %113 = vmatprep.subr.mxu0 0.0
    %114 = vmatpush1.msra.mxu0 0.0
    %115 = vmatprep.subr.mxu0 0.0
    %116 = vmatpush1.msra.mxu0 0.0
    %117 = vmatprep.subr.mxu0 0.0
    %118 = vmatpush1.msra.mxu0 0.0
    %119 = vmatprep.subr.mxu0 0.0
    %120 = vmatpush1.msra.mxu0 0.0
    %121 = vmatprep.subr.mxu0 0.0
    %122 = vmatpush1.msra.mxu0 0.0
    %123 = vmatprep.subr.mxu0 0.0
    %124 = vmatpush1.msra.mxu0 0.0
    %125 = vmatprep.subr.mxu0 0.0
    %126 = vmatpush1.msra.mxu0 0.0
    %127 = vmatprep.subr.mxu0 0.0
    %128 = vmatpush1.msra.mxu0 0.0
    %129 = vmatprep.subr.mxu0 0.0
    %130 = vmatpush1.msra.mxu0 0.0
    %131 = vmatprep.subr.mxu0 0.0
    %132 = vmatpush1.msra.mxu0 0.0
    %133 = vmatprep.subr.mxu0 0.0
    %134 = vmatpush1.msra.mxu0 0.0
    %135 = vmatprep.subr.mxu0 0.0
    %136 = vmatpush1.msra.mxu0 0.0
    %137 = vmatprep.subr.mxu0 0.0
    %138 = vmatpush1.msra.mxu0 0.0
    %139 = vmatprep.subr.mxu0 0.0
    %140 = vmatpush1.msra.mxu0 0.0
    %141 = vmatprep.subr.mxu0 0.0
    %142 = vmatpush1.msra.mxu0 0.0
    %143 = vmatprep.mubr.f32.mxu0 0.0
    %144 = vmatmul.mubr.f32.gmra.mrb[0].mxu0 %v74
    %v145 = vpop.f32.mrb[0].mxu0
    %v146 = vadd.f32 %v71, %v145
    %v147 = vpop.f32.mrb[0].mxu0
    %148 = vmatprep.mubr.f32.mxu0 0.0
    %149 = vmatmul.mubr.f32.gmra.mrb[0].mxu0 %v77
    %v150 = vpop.f32.mrb[0].mxu0
    %v151 = vadd.f32 %v71, %v150
    %v152 = vpop.f32.mrb[0].mxu0
    %153 = vdwg.mxu0
    %v154 = vld [vmem:[#allocation5] sm:$0xff]
    %v155 = vld [vmem:[#allocation5 + $0x8] sm:$0xff]
    %v156 = vadd.f32 %v146, %v154
    %v157 = vadd.f32 %v151, %v155
    %v158 = vsel %vm72, %v156, 0.0
    %159 = vadd.xlane.f32.xlu0 %v158
    %v160 = vpop.xlane.xlu0 %159
    %v161 = vsel %vm72, %v157, 0.0
    %162 = vadd.xlane.f32.xlu0 %v161
    %v163 = vpop.xlane.xlu0 %162
    %v164 = vrcp.pop 32.0
    %v165 = vmul.f32 %v160, %v164
    %v166 = vmul.f32 %v163, %v164
    %v167 = vsub.f32 %v156, %v165
    %v168 = vsub.f32 %v157, %v166
    %v169 = vmul.f32 %v167, %v167
    %v170 = vmul.f32 %v168, %v168
    %v171 = vsel %vm72, %v169, 0.0
    %172 = vadd.xlane.f32.xlu0 %v171
    %v173 = vpop.xlane.xlu0 %172
    %v174 = vsel %vm72, %v170, 0.0
    %175 = vadd.xlane.f32.xlu0 %v174
    %v176 = vpop.xlane.xlu0 %175
    %v177 = vmul.f32 %v173, %v164
    %v178 = vmul.f32 %v176, %v164
    %v179 = vadd.f32 %v177, 1e-12
    %v180 = vadd.f32 %v178, 1e-12
    %v181 = vrsqrt.pop %v179
    %v182 = vrsqrt.pop %v180
    %v183 = vmul.f32 %v167, %v181
    %v184 = vmul.f32 %v168, %v182
    %v185 = vlaneseq
    %v186 = vshrl.u32 %v185, 7
    %v187 = vsub.s32 0, %v186
    %v188 = vrot.slane %v66, %v187
    %v189 = vmul.f32 %v188, %v183
    %v190 = vmul.f32 %v188, %v184
    %v191 = vlaneseq
    %v192 = vshrl.u32 %v191, 7
    %v193 = vsub.s32 0, %v192
    %v194 = vrot.slane %v67, %v193
    %v195 = vadd.f32 %v189, %v194
    %v196 = vadd.f32 %v190, %v194
    %197 = vst.msk [vmem:[#allocation8] sm:$0xff] %vm72, %v195
    %198 = vst.msk [vmem:[#allocation8 + $0x8] sm:$0xff] %vm72, %v196
    // Predicated region
    $region30: #{tpu_custom_call.1} parent=1 // pred_check
      _
    $region31: #{tpu_custom_call.1} parent=1 // pred_check_branch
      %200 = sbr.rel (0) target = $region33
    $region32: #{tpu_custom_call.1} parent=1 // pred_region
      %s202 = ssub.s32 256, 256
      %203 = vsyncadd [#allocation4], %s202
      %s204 = sshll.u32 [#allocation8], 4
      %s205 = int_to_ptr.vmem [resolvable:$true] %s204
      %210 = dma.vmem_to_hbm [thread:$0]  %s205, 256, %s4, [#allocation4], 128, 128, 8
    $region33: #{tpu_custom_call.1} parent=1 // pred_fallthru
      _
    // Predicated region
    $region34: #{tpu_custom_call.1} parent=1 // pred_check
      _
    $region35: #{tpu_custom_call.1} parent=1 // pred_check_branch
      %212 = sbr.rel (0) target = $region37
    $region36: #{tpu_custom_call.1} parent=1 // pred_region
      %213 = dma.done [#allocation4], 256
    $region37: #{tpu_custom_call.1} parent=1 // pred_fallthru
      _
    %214 = vsyncpa [#allocation3], 1
    %215 = vsyncpa [#allocation6], 1
    %216 = vsyncpa [#allocation4], 1

// kernel: tpu_custom_call.1
$region0: #{tpu_custom_call.1}
  #allocation0 [shape = 'u32[]', space=smem, size = 0x4, offset = 0x4, fixed_abs, tag = 'smem constant byte address 0x4 - core index']
  #allocation1 [shape = 'u32[144,128]{1,0:T(1,128)}', space=vmem, size = 0x12000, scoped, tag = 'internal scratch']
  %s0 = inlined_call_operand.hbm [shape: f32[16,32], index: 0, kind: input, shape index: {}]
  %s1 = inlined_call_operand.hbm [shape: f32[16,32], index: 1, kind: input, shape index: {}]
  %s2 = inlined_call_operand.hbm [shape: f32[32,32], index: 2, kind: input, shape index: {}]
  %s3 = inlined_call_operand.vmem [shape: f32[3,32], index: 3, kind: input, shape index: {}]
  %s4 = inlined_call_operand.hbm [shape: f32[16,32], index: 4, kind: output, shape index: {}]
  %s5 = sld [smem:[#allocation0]]
  $region38: #{tpu_custom_call.1} parent=0
    _
  %s7 = ssub.s32 1, %s5
  %s8 = scalar_select 0, %s7, %s5
  $region1: #{tpu_custom_call.1} parent=0
    #allocation2 [shape = 'u8[8192]{0}', space=vmem, size = 0x2000, scoped, tag = 'input window, operand 0, single buffered']
    #allocation3 [shape = 's32[1]{0}', space=sflag, size = 0x4, scoped, tag = 'scoped memory for tpu_custom_call.1']
    #allocation4 [shape = 's32[1]{0}', space=sflag, size = 0x4, scoped, tag = 'scoped memory for tpu_custom_call.1']
    #allocation5 [shape = 'u8[8192]{0}', space=vmem, size = 0x2000, scoped, tag = 'input window, operand 1, single buffered']
    #allocation6 [shape = 's32[1]{0}', space=sflag, size = 0x4, scoped, tag = 'scoped memory for tpu_custom_call.1']
    #allocation7 [shape = 'u8[16384]{0}', space=vmem, size = 0x4000, scoped, tag = 'input window, operand 2, single buffered']
    #allocation8 [shape = 'u8[8192]{0}', space=vmem, size = 0x2000, scoped, tag = 'output window, operand 0, single buffered']
    %9 = vsyncpa [#allocation3], 0
    %10 = vsyncpa [#allocation6], 0
    %11 = vsyncpa [#allocation4], 0
    // Predicated region
    $region2: #{tpu_custom_call.1} parent=1 // pred_check
      _
    $region3: #{tpu_custom_call.1} parent=1 // pred_check_branch
      %13 = sbr.rel (0) target = $region5
    $region4: #{tpu_custom_call.1} parent=1 // pred_region
      %s15 = ssub.s32 256, 256
      %16 = vsyncadd [#allocation3], %s15
      %s17 = sshll.u32 [#allocation2], 4
      %s18 = int_to_ptr.vmem [resolvable:$true] %s17
      %23 = dma.hbm_to_vmem [thread:$0]  %s0, 256, %s18, [#allocation3], 128, 128, 8
    $region5: #{tpu_custom_call.1} parent=1 // pred_fallthru
      _
    // Predicated region
    $region6: #{tpu_custom_call.1} parent=1 // pred_check
      _
    $region7: #{tpu_custom_call.1} parent=1 // pred_check_branch
      %25 = sbr.rel (0) target = $region9
    $region8: #{tpu_custom_call.1} parent=1 // pred_region
      %s27 = ssub.s32 256, 256
      %28 = vsyncadd [#allocation6], %s27
      %s29 = sshll.u32 [#allocation5], 4
      %s30 = int_to_ptr.vmem [resolvable:$true] %s29
      %35 = dma.hbm_to_vmem [thread:$0]  %s1, 256, %s30, [#allocation6], 128, 128, 8
    $region9: #{tpu_custom_call.1} parent=1 // pred_fallthru
      _
    // Predicated region
    $region10: #{tpu_custom_call.1} parent=1 // pred_check
      _
    $region11: #{tpu_custom_call.1} parent=1 // pred_check_branch
      %37 = sbr.rel (0) target = $region13
    $region12: #{tpu_custom_call.1} parent=1 // pred_region
      %s39 = ssub.s32 512, 512
      %40 = vsyncadd [#allocation6], %s39
      %s41 = sshll.u32 [#allocation7], 4
      %s42 = int_to_ptr.vmem [resolvable:$true] %s41
      %47 = dma.hbm_to_vmem [thread:$0]  %s2, 512, %s42, [#allocation6], 128, 128, 8
    $region13: #{tpu_custom_call.1} parent=1 // pred_fallthru
      _
    // Predicated region
    $region14: #{tpu_custom_call.1} parent=1 // pred_check
      _
    $region15: #{tpu_custom_call.1} parent=1 // pred_check_branch
      %49 = sbr.rel (0) target = $region17
    $region16: #{tpu_custom_call.1} parent=1 // pred_region
      _
    $region17: #{tpu_custom_call.1} parent=1 // pred_fallthru
      _
    // Predicated region
    $region18: #{tpu_custom_call.1} parent=1 // pred_check
      _
    $region19: #{tpu_custom_call.1} parent=1 // pred_check_branch
      %51 = sbr.rel (0) target = $region21
    $region20: #{tpu_custom_call.1} parent=1 // pred_region
      %52 = dma.done [#allocation3], 256
    $region21: #{tpu_custom_call.1} parent=1 // pred_fallthru
      _
    // Predicated region
    $region22: #{tpu_custom_call.1} parent=1 // pred_check
      _
    $region23: #{tpu_custom_call.1} parent=1 // pred_check_branch
      %54 = sbr.rel (0) target = $region25
    $region24: #{tpu_custom_call.1} parent=1 // pred_region
      %55 = dma.done [#allocation6], 256
    $region25: #{tpu_custom_call.1} parent=1 // pred_fallthru
      _
    // Predicated region
    $region26: #{tpu_custom_call.1} parent=1 // pred_check
      _
    $region27: #{tpu_custom_call.1} parent=1 // pred_check_branch
      %57 = sbr.rel (0) target = $region29
    $region28: #{tpu_custom_call.1} parent=1 // pred_region
      %58 = dma.done [#allocation6], 512
    $region29: #{tpu_custom_call.1} parent=1 // pred_fallthru
      _
    %v59 = vld [vmem:[#allocation2] sm:$0xff]
    %v60 = vld [vmem:[#allocation2 + $0x8] sm:$0xff]
    %v61 = vld [vmem:[#allocation7] sm:$0xff]
    %v62 = vld [vmem:[#allocation7 + $0x8] sm:$0xff]
    %v63 = vld [vmem:[#allocation7 + $0x10] sm:$0xff]
    %v64 = vld [vmem:[#allocation7 + $0x18] sm:$0xff]
    %v65 = vld [vmem:[%s3] sm:$0x1]
    %v66 = vld [vmem:[%s3 + $0x1] sm:$0x1]
    %v67 = vld [vmem:[%s3 + $0x2] sm:$0x1]
    %v68 = vlaneseq
    %v69 = vshrl.u32 %v68, 7
    %v70 = vsub.s32 0, %v69
    %v71 = vrot.slane %v65, %v70
    %vm72 = vcmask 261120
    %v74 = vsel %vm72, %v59, 0
    %v77 = vsel %vm72, %v60, 0
    %79 = vmatprep.subr.mxu0 0.0
    %80 = vmatpush1.msra.mxu0 %v61
    %81 = vmatprep.subr.mxu0 0.0
    %82 = vmatpush1.msra.mxu0 %v62
    %83 = vmatprep.subr.mxu0 0.0
    %84 = vmatpush1.msra.mxu0 %v63
    %85 = vmatprep.subr.mxu0 0.0
    %86 = vmatpush1.msra.mxu0 %v64
    %87 = vmatprep.subr.mxu0 0.0
    %88 = vmatpush1.msra.mxu0 0.0
    %89 = vmatprep.subr.mxu0 0.0
    %90 = vmatpush1.msra.mxu0 0.0
    %91 = vmatprep.subr.mxu0 0.0
    %92 = vmatpush1.msra.mxu0 0.0
    %93 = vmatprep.subr.mxu0 0.0
    %94 = vmatpush1.msra.mxu0 0.0
    %95 = vmatprep.subr.mxu0 0.0
    %96 = vmatpush1.msra.mxu0 0.0
    %97 = vmatprep.subr.mxu0 0.0
    %98 = vmatpush1.msra.mxu0 0.0
    %99 = vmatprep.subr.mxu0 0.0
    %100 = vmatpush1.msra.mxu0 0.0
    %101 = vmatprep.subr.mxu0 0.0
    %102 = vmatpush1.msra.mxu0 0.0
    %103 = vmatprep.subr.mxu0 0.0
    %104 = vmatpush1.msra.mxu0 0.0
    %105 = vmatprep.subr.mxu0 0.0
    %106 = vmatpush1.msra.mxu0 0.0
    %107 = vmatprep.subr.mxu0 0.0
    %108 = vmatpush1.msra.mxu0 0.0
    %109 = vmatprep.subr.mxu0 0.0
    %110 = vmatpush1.msra.mxu0 0.0
    %111 = vmatprep.subr.mxu0 0.0
    %112 = vmatpush1.msra.mxu0 0.0
    %113 = vmatprep.subr.mxu0 0.0
    %114 = vmatpush1.msra.mxu0 0.0
    %115 = vmatprep.subr.mxu0 0.0
    %116 = vmatpush1.msra.mxu0 0.0
    %117 = vmatprep.subr.mxu0 0.0
    %118 = vmatpush1.msra.mxu0 0.0
    %119 = vmatprep.subr.mxu0 0.0
    %120 = vmatpush1.msra.mxu0 0.0
    %121 = vmatprep.subr.mxu0 0.0
    %122 = vmatpush1.msra.mxu0 0.0
    %123 = vmatprep.subr.mxu0 0.0
    %124 = vmatpush1.msra.mxu0 0.0
    %125 = vmatprep.subr.mxu0 0.0
    %126 = vmatpush1.msra.mxu0 0.0
    %127 = vmatprep.subr.mxu0 0.0
    %128 = vmatpush1.msra.mxu0 0.0
    %129 = vmatprep.subr.mxu0 0.0
    %130 = vmatpush1.msra.mxu0 0.0
    %131 = vmatprep.subr.mxu0 0.0
    %132 = vmatpush1.msra.mxu0 0.0
    %133 = vmatprep.subr.mxu0 0.0
    %134 = vmatpush1.msra.mxu0 0.0
    %135 = vmatprep.subr.mxu0 0.0
    %136 = vmatpush1.msra.mxu0 0.0
    %137 = vmatprep.subr.mxu0 0.0
    %138 = vmatpush1.msra.mxu0 0.0
    %139 = vmatprep.subr.mxu0 0.0
    %140 = vmatpush1.msra.mxu0 0.0
    %141 = vmatprep.subr.mxu0 0.0
    %142 = vmatpush1.msra.mxu0 0.0
    %143 = vmatprep.mubr.f32.mxu0 0.0
    %144 = vmatmul.mubr.f32.gmra.mrb[0].mxu0 %v74
    %v145 = vpop.f32.mrb[0].mxu0
    %v146 = vadd.f32 %v71, %v145
    %v147 = vpop.f32.mrb[0].mxu0
    %148 = vmatprep.mubr.f32.mxu0 0.0
    %149 = vmatmul.mubr.f32.gmra.mrb[0].mxu0 %v77
    %v150 = vpop.f32.mrb[0].mxu0
    %v151 = vadd.f32 %v71, %v150
    %v152 = vpop.f32.mrb[0].mxu0
    %153 = vdwg.mxu0
    %v154 = vld [vmem:[#allocation5] sm:$0xff]
    %v155 = vld [vmem:[#allocation5 + $0x8] sm:$0xff]
    %v156 = vadd.f32 %v146, %v154
    %v157 = vadd.f32 %v151, %v155
    %v158 = vsel %vm72, %v156, 0.0
    %159 = vadd.xlane.f32.xlu0 %v158
    %v160 = vpop.xlane.xlu0 %159
    %v161 = vsel %vm72, %v157, 0.0
    %162 = vadd.xlane.f32.xlu0 %v161
    %v163 = vpop.xlane.xlu0 %162
    %v164 = vrcp.pop 32.0
    %v165 = vmul.f32 %v160, %v164
    %v166 = vmul.f32 %v163, %v164
    %v167 = vsub.f32 %v156, %v165
    %v168 = vsub.f32 %v157, %v166
    %v169 = vmul.f32 %v167, %v167
    %v170 = vmul.f32 %v168, %v168
    %v171 = vsel %vm72, %v169, 0.0
    %172 = vadd.xlane.f32.xlu0 %v171
    %v173 = vpop.xlane.xlu0 %172
    %v174 = vsel %vm72, %v170, 0.0
    %175 = vadd.xlane.f32.xlu0 %v174
    %v176 = vpop.xlane.xlu0 %175
    %v177 = vmul.f32 %v173, %v164
    %v178 = vmul.f32 %v176, %v164
    %v179 = vadd.f32 %v177, 1e-12
    %v180 = vadd.f32 %v178, 1e-12
    %v181 = vrsqrt.pop %v179
    %v182 = vrsqrt.pop %v180
    %v183 = vmul.f32 %v167, %v181
    %v184 = vmul.f32 %v168, %v182
    %v185 = vlaneseq
    %v186 = vshrl.u32 %v185, 7
    %v187 = vsub.s32 0, %v186
    %v188 = vrot.slane %v66, %v187
    %v189 = vmul.f32 %v188, %v183
    %v190 = vmul.f32 %v188, %v184
    %v191 = vlaneseq
    %v192 = vshrl.u32 %v191, 7
    %v193 = vsub.s32 0, %v192
    %v194 = vrot.slane %v67, %v193
    %v195 = vadd.f32 %v189, %v194
    %v196 = vadd.f32 %v190, %v194
    %197 = vst.msk [vmem:[#allocation8] sm:$0xff] %vm72, %v195
    %198 = vst.msk [vmem:[#allocation8 + $0x8] sm:$0xff] %vm72, %v196
    // Predicated region
    $region30: #{tpu_custom_call.1} parent=1 // pred_check
      _
    $region31: #{tpu_custom_call.1} parent=1 // pred_check_branch
      %200 = sbr.rel (0) target = $region33
    $region32: #{tpu_custom_call.1} parent=1 // pred_region
      %s202 = ssub.s32 256, 256
      %203 = vsyncadd [#allocation4], %s202
      %s204 = sshll.u32 [#allocation8], 4
      %s205 = int_to_ptr.vmem [resolvable:$true] %s204
      %210 = dma.vmem_to_hbm [thread:$0]  %s205, 256, %s4, [#allocation4], 128, 128, 8
    $region33: #{tpu_custom_call.1} parent=1 // pred_fallthru
      _
    // Predicated region
    $region34: #{tpu_custom_call.1} parent=1 // pred_check
      _
    $region35: #{tpu_custom_call.1} parent=1 // pred_check_branch
      %212 = sbr.rel (0) target = $region37
    $region36: #{tpu_custom_call.1} parent=1 // pred_region
      %213 = dma.done [#allocation4], 256
    $region37: #{tpu_custom_call.1} parent=1 // pred_fallthru
      _
    %214 = vsyncpa [#allocation3], 1
    %215 = vsyncpa [#allocation6], 1
    %216 = vsyncpa [#allocation4], 1

</llo_original>
